<compile_context>
chip_gen: v7x
topology: tpu7x:2x2x1
jax: 0.10.0
libtpu: 0.0.40
codegen_flags: <defaults>
</compile_context>

<pallas_src>
import functools

import jax
import jax.numpy as jnp
from jax.experimental import pallas as pl
from jax.experimental.pallas import tpu as pltpu

PATCH = 8                      # 8x8 spatial downsample (CI8x8)
C_IN = 3                       # RGB input channels
C_LAT = 16                     # latent channels
P_FEAT = C_IN * PATCH * PATCH  # 192 features per latent position
MODEL_DTYPE = jnp.bfloat16     # mirrors model_dtype='bfloat16'


def _default_bf16_epilogue():
    """bf16 tanh epilogue on v6e/v7x (bf16 EUP); f32 on v5e and older."""
    try:
        kind = jax.devices()[0].device_kind.lower()
    except Exception:
        return True
    return not any(tag in kind for tag in ("v2", "v3", "v4", "v5"))


def _make_ae_kernel(n_strips, h8, w8, bf16_epilogue, needs_guard):
    """Fused encode+decode over a block of `n_strips` latent rows.

    Kernel refs:
      x_ref : (1, C_IN, n_strips, 8, 8, W/8)  input pixels (any float dtype)
      we_ref: (C_LAT, P_FEAT)                 encoder weight (transposed), bf16
      be_ref: (C_LAT, 1)                      encoder bias, f32
      wd_ref: (P_FEAT, C_LAT)                 decoder weight (transposed), bf16
      bd_ref: (P_FEAT, 1)                     decoder bias, f32
      o_ref : (1, C_IN, n_strips, 8, 8, W/8)  reconstruction, bf16
    """

    def kernel(x_ref, we_ref, be_ref, wd_ref, bd_ref, o_ref):
        we = we_ref[...]                       # (16, 192) bf16, resident
        be = be_ref[...]                       # (16, 1)   f32
        wd = wd_ref[...]                       # (192, 16) bf16
        bd = bd_ref[...]                       # (192, 1)  f32
        if needs_guard:
            valid = jnp.minimum(n_strips, h8 - pl.program_id(1) * n_strips)

        for s in range(n_strips):
            def strip(s=s):
                # (C, 8, 8, W/8) -> (192, W/8): layout-preserving merge of the
                # sublane-side dims (features on sublanes, positions on lanes).
                xs = x_ref[0, :, s].reshape(P_FEAT, w8).astype(MODEL_DTYPE)
                # encode: latent in [-1, 1]  (f32 MXU accumulation)
                lat = jnp.dot(we, xs, preferred_element_type=jnp.float32)
                lat = jnp.tanh(lat + be).astype(MODEL_DTYPE)      # (16, W/8)
                # decode: reconstruction in [-1, 1]
                rec = jnp.dot(wd, lat, preferred_element_type=jnp.float32)
                rec = rec + bd                                    # (192, W/8) f32
                rec = rec.reshape(C_IN, PATCH, PATCH, w8)         # f32, trivial
                if bf16_epilogue:
                    rec = jnp.tanh(rec.astype(MODEL_DTYPE))       # bf16 EUP
                else:
                    rec = jnp.tanh(rec).astype(MODEL_DTYPE)       # v5e: f32 EUP
                o_ref[0, :, s] = rec

            if needs_guard:
                pl.when(s < valid)(strip)
            else:
                strip()

    return kernel


def _choose_strips(batch, h8, w8, strips_per_step, positions_per_step):
    """Pick latent rows per grid step: big enough to amortize the ~0.35us
    per-step overhead, small enough for VMEM / code size, and giving >= 2
    grid steps whenever possible (v7x megacore)."""
    if strips_per_step is not None:
        sh = max(1, min(int(strips_per_step), h8))
    else:
        target = max(1, min(h8, 128, pl.cdiv(positions_per_step, w8)))
        sh = 1
        for d in range(target, 0, -1):         # prefer an exact divisor of H/8
            if h8 % d == 0:
                sh = d
                break
        if h8 > target and sh < max(1, target // 2):
            sh = target                        # ragged tail handled in-kernel
    if batch * pl.cdiv(h8, sh) < 2 and h8 > 1:
        sh = pl.cdiv(h8, 2)                    # ensure >= 2 grid steps
    return sh


def init_params(key):
    k1, k2, k3, k4 = jax.random.split(key, 4)
    w_enc = (jax.random.normal(k1, (P_FEAT, C_LAT), jnp.float32)
             / jnp.sqrt(P_FEAT)).astype(MODEL_DTYPE)
    b_enc = (0.01 * jax.random.normal(k2, (1, C_LAT), jnp.float32)).astype(MODEL_DTYPE)
    w_dec = (jax.random.normal(k3, (C_LAT, P_FEAT), jnp.float32)
             / jnp.sqrt(C_LAT)).astype(MODEL_DTYPE)
    b_dec = (0.01 * jax.random.normal(k4, (1, P_FEAT), jnp.float32)).astype(MODEL_DTYPE)
    return w_enc, b_enc, w_dec, b_dec


def cosmos_ci_forward(x_nchw, params, *, strips_per_step=None,
                      positions_per_step=4096, bf16_epilogue=None):
    """Full forward pass: encode then decode.  Input NCHW float in [-1, 1],
    output NCHW bf16 in [-1, 1]."""
    w_enc, b_enc, w_dec, b_dec = params
    B, C, H, W = x_nchw.shape
    assert C == C_IN, f"expected {C_IN} input channels, got {C}"
    assert H % PATCH == 0 and W % PATCH == 0, "H and W must be multiples of 8"
    h8, w8 = H // PATCH, W // PATCH
    if bf16_epilogue is None:
        bf16_epilogue = _default_bf16_epilogue()

    sh = _choose_strips(B, h8, w8, strips_per_step, positions_per_step)
    n_h = pl.cdiv(h8, sh)
    needs_guard = (h8 % sh) != 0   # Pallas clips the boundary block's DMA;
                                   # the in-kernel guard skips the dead strips.

    # Zero-copy reshape: (B, C, H, W) -> (B, C, H/8, kh, kw, W/8).  No
    # patchify transpose and no padding copy are needed anywhere.
    x_r = x_nchw.reshape(B, C, h8, PATCH, PATCH, w8)

    we_t = jnp.transpose(w_enc).astype(MODEL_DTYPE)        # (16, 192)
    wd_t = jnp.transpose(w_dec).astype(MODEL_DTYPE)        # (192, 16)
    be = b_enc.reshape(C_LAT, 1).astype(jnp.float32)
    bd = b_dec.reshape(P_FEAT, 1).astype(jnp.float32)

    n_pos = B * h8 * w8
    cost = pl.CostEstimate(
        flops=4 * n_pos * P_FEAT * C_LAT,                  # useful matmul work only
        transcendentals=n_pos * (C_LAT + P_FEAT),
        bytes_accessed=n_pos * P_FEAT * (x_nchw.dtype.itemsize + 2)
        + 2 * (2 * P_FEAT * C_LAT + C_LAT + P_FEAT),
    )

    kernel = _make_ae_kernel(sh, h8, w8, bf16_epilogue, needs_guard)
    block = (1, C_IN, sh, PATCH, PATCH, w8)

    out = pl.pallas_call(
        kernel,
        out_shape=jax.ShapeDtypeStruct((B, C_IN, h8, PATCH, PATCH, w8),
                                       MODEL_DTYPE),
        grid=(B, n_h),
        in_specs=[
            pl.BlockSpec(block, lambda b, h: (b, 0, h, 0, 0, 0)),
            pl.BlockSpec((C_LAT, P_FEAT), lambda b, h: (0, 0)),   # W_enc^T resident
            pl.BlockSpec((C_LAT, 1), lambda b, h: (0, 0)),        # b_enc (f32)
            pl.BlockSpec((P_FEAT, C_LAT), lambda b, h: (0, 0)),   # W_dec^T resident
            pl.BlockSpec((P_FEAT, 1), lambda b, h: (0, 0)),       # b_dec (f32)
        ],
        out_specs=pl.BlockSpec(block, lambda b, h: (b, 0, h, 0, 0, 0)),
        compiler_params=pltpu.CompilerParams(
            dimension_semantics=("parallel", "parallel")),
        cost_estimate=cost,
    )(x_r, we_t, be, wd_t, bd)

    # Zero-copy inverse reshape back to NCHW.
    return out.reshape(B, C_IN, H, W)


def _reference_forward(x_nchw, params, *, bf16_epilogue=None):
    """Pure-JAX reference of the same synthetic AE, for correctness checking."""
    if bf16_epilogue is None:
        bf16_epilogue = _default_bf16_epilogue()
    w_enc, b_enc, w_dec, b_dec = params
    B, C, H, W = x_nchw.shape
    h8, w8 = H // PATCH, W // PATCH
    x_r = x_nchw.reshape(B, C, h8, PATCH, PATCH, w8).astype(MODEL_DTYPE)
    we = w_enc.reshape(C_IN, PATCH, PATCH, C_LAT).astype(MODEL_DTYPE)
    lat = jnp.einsum("bchkqw,ckql->blhw", x_r, we,
                     preferred_element_type=jnp.float32)
    lat = jnp.tanh(lat + b_enc.reshape(1, C_LAT, 1, 1).astype(jnp.float32))
    lat = lat.astype(MODEL_DTYPE)                 # B x 16 x H/8 x W/8, [-1, 1]
    wd = w_dec.reshape(C_LAT, C_IN, PATCH, PATCH).astype(MODEL_DTYPE)
    rec = jnp.einsum("blhw,lckq->bchkqw", lat, wd,
                     preferred_element_type=jnp.float32)
    rec = rec + b_dec.reshape(C_IN, PATCH, PATCH).astype(jnp.float32)[
        None, :, None, :, :, None]
    if bf16_epilogue:
        rec = jnp.tanh(rec.astype(MODEL_DTYPE))
    else:
        rec = jnp.tanh(rec).astype(MODEL_DTYPE)
    return rec.reshape(B, C_IN, H, W)


if __name__ == "__main__":
    key = jax.random.PRNGKey(0)
    k_x, k_x2, k_p = jax.random.split(key, 3)
    params = init_params(k_p)

    # B x 3 x H x W in [-1, 1], as passed to the module's encode()
    B, H, W = 2, 16, 16
    x = jax.random.uniform(k_x, (B, C_IN, H, W), jnp.float32,
                           minval=-1.0, maxval=1.0)
    fwd = jax.jit(cosmos_ci_forward)
    y = jax.block_until_ready(fwd(x, params))

    assert y.shape == (B, C_IN, H, W), y.shape
    assert y.dtype == MODEL_DTYPE, y.dtype
    y32 = y.astype(jnp.float32)
    assert bool(jnp.all(jnp.isfinite(y32)))
    # output stays in [-1, 1] (tanh), matching the documented decode range
    assert float(jnp.max(jnp.abs(y32))) <= 1.0 + 1e-2
    ref = _reference_forward(x, params).astype(jnp.float32)
    assert float(jnp.max(jnp.abs(y32 - ref))) < 2e-2

    # second case: multi-step grid + multi-strip blocks (in-kernel strip loop)
    B2, H2, W2 = 1, 64, 64
    x2 = jax.random.uniform(k_x2, (B2, C_IN, H2, W2), jnp.float32,
                            minval=-1.0, maxval=1.0)
    fwd2 = jax.jit(functools.partial(cosmos_ci_forward, strips_per_step=2))
    y2 = jax.block_until_ready(fwd2(x2, params))
    assert y2.shape == (B2, C_IN, H2, W2), y2.shape
    ref2 = _reference_forward(x2, params).astype(jnp.float32)
    assert float(jnp.max(jnp.abs(y2.astype(jnp.float32) - ref2))) < 2e-2

    print("KERNEL_OK")
</pallas_src>

<mosaic_0001>
module attributes {stable_mosaic.version = 11 : i64} {
  func.func @kernel(%arg0: i32, %arg1: i32, %arg2: memref<1x3x2x8x8x2xf32, #tpu.memory_space<vmem>>, %arg3: memref<16x192xbf16, #tpu.memory_space<vmem>>, %arg4: memref<16x1xf32, #tpu.memory_space<vmem>>, %arg5: memref<192x16xbf16, #tpu.memory_space<vmem>>, %arg6: memref<192x1xf32, #tpu.memory_space<vmem>>, %arg7: memref<1x3x2x8x8x2xbf16, #tpu.memory_space<vmem>>) attributes {dimension_semantics = [#tpu.dimension_semantics<parallel>, #tpu.dimension_semantics<parallel>], iteration_bounds = array<i64: 2, 1>, scalar_prefetch = 0 : i64, scratch_operands = 0 : i64, tpu.core_type = #tpu.core_type<tc>, window_params = [{transform_indices = @transform_0, window_bounds = array<i64: 1, 3, 2, 8, 8, 2>}, {pipeline_mode = #tpu.pipeline_mode<synchronous>, transform_indices = @transform_1, window_bounds = array<i64: 16, 192>}, {pipeline_mode = #tpu.pipeline_mode<synchronous>, transform_indices = @transform_2, window_bounds = array<i64: 16, 1>}, {pipeline_mode = #tpu.pipeline_mode<synchronous>, transform_indices = @transform_3, window_bounds = array<i64: 192, 16>}, {pipeline_mode = #tpu.pipeline_mode<synchronous>, transform_indices = @transform_4, window_bounds = array<i64: 192, 1>}, {transform_indices = @transform_5, window_bounds = array<i64: 1, 3, 2, 8, 8, 2>}]} {
    %c0 = arith.constant 0 : index
    %c0_0 = arith.constant 0 : index
    %0 = vector.load %arg3[%c0, %c0_0] : memref<16x192xbf16, #tpu.memory_space<vmem>>, vector<16x192xbf16>
    %c0_1 = arith.constant 0 : index
    %c0_2 = arith.constant 0 : index
    %1 = vector.load %arg4[%c0_1, %c0_2] : memref<16x1xf32, #tpu.memory_space<vmem>>, vector<16x1xf32>
    %c0_3 = arith.constant 0 : index
    %c0_4 = arith.constant 0 : index
    %2 = vector.load %arg5[%c0_3, %c0_4] : memref<192x16xbf16, #tpu.memory_space<vmem>>, vector<192x16xbf16>
    %c0_5 = arith.constant 0 : index
    %c0_6 = arith.constant 0 : index
    %3 = vector.load %arg6[%c0_5, %c0_6] : memref<192x1xf32, #tpu.memory_space<vmem>>, vector<192x1xf32>
    %c0_7 = arith.constant 0 : index
    %c0_8 = arith.constant 0 : index
    %c0_9 = arith.constant 0 : index
    %c0_10 = arith.constant 0 : index
    %c0_11 = arith.constant 0 : index
    %c0_12 = arith.constant 0 : index
    %4 = vector.load %arg2[%c0_7, %c0_8, %c0_9, %c0_10, %c0_11, %c0_12] : memref<1x3x2x8x8x2xf32, #tpu.memory_space<vmem>>, vector<1x3x1x8x8x2xf32>
    %5 = vector.shape_cast %4 : vector<1x3x1x8x8x2xf32> to vector<3x8x8x2xf32>
    %6 = vector.shape_cast %5 : vector<3x8x8x2xf32> to vector<192x2xf32>
    %7 = arith.truncf %6 : vector<192x2xf32> to vector<192x2xbf16>
    %cst = arith.constant dense<0.000000e+00> : vector<16x2xf32>
    %8 = tpu.matmul %0, %7, %cst {dimension_numbers = #tpu.dot_dimension_numbers<[1], [0], [0], [1], [0, 0, 1, 1], [], []>} : vector<16x192xbf16>, vector<192x2xbf16>, vector<16x2xf32> -> vector<16x2xf32>
    %9 = vector.broadcast %1 : vector<16x1xf32> to vector<16x2xf32>
    %10 = arith.addf %8, %9 : vector<16x2xf32>
    %11 = math.tanh %10 : vector<16x2xf32>
    %12 = arith.truncf %11 : vector<16x2xf32> to vector<16x2xbf16>
    %cst_13 = arith.constant dense<0.000000e+00> : vector<192x2xf32>
    %13 = tpu.matmul %2, %12, %cst_13 {dimension_numbers = #tpu.dot_dimension_numbers<[1], [0], [0], [1], [0, 0, 1, 1], [], []>} : vector<192x16xbf16>, vector<16x2xbf16>, vector<192x2xf32> -> vector<192x2xf32>
    %14 = vector.broadcast %3 : vector<192x1xf32> to vector<192x2xf32>
    %15 = arith.addf %13, %14 : vector<192x2xf32>
    %16 = vector.shape_cast %15 : vector<192x2xf32> to vector<3x8x8x2xf32>
    %17 = arith.truncf %16 : vector<3x8x8x2xf32> to vector<3x8x8x2xbf16>
    %18 = math.tanh %17 : vector<3x8x8x2xbf16>
    %c0_14 = arith.constant 0 : index
    %c0_15 = arith.constant 0 : index
    %c0_16 = arith.constant 0 : index
    %c0_17 = arith.constant 0 : index
    %c0_18 = arith.constant 0 : index
    %c0_19 = arith.constant 0 : index
    %19 = vector.load %arg7[%c0_14, %c0_15, %c0_16, %c0_17, %c0_18, %c0_19] : memref<1x3x2x8x8x2xbf16, #tpu.memory_space<vmem>>, vector<1x3x1x8x8x2xbf16>
    %20 = vector.shape_cast %19 : vector<1x3x1x8x8x2xbf16> to vector<3x8x8x2xbf16>
    %21 = vector.shape_cast %18 : vector<3x8x8x2xbf16> to vector<1x3x1x8x8x2xbf16>
    tpu.vector_store %arg7[%c0_14, %c0_15, %c0_16, %c0_17, %c0_18, %c0_19], %21 {strides = array<i32>} : memref<1x3x2x8x8x2xbf16, #tpu.memory_space<vmem>>, vector<1x3x1x8x8x2xbf16>,
    %c0_20 = arith.constant 0 : index
    %c0_21 = arith.constant 0 : index
    %c1 = arith.constant 1 : index
    %c0_22 = arith.constant 0 : index
    %c0_23 = arith.constant 0 : index
    %c0_24 = arith.constant 0 : index
    %22 = vector.load %arg2[%c0_20, %c0_21, %c1, %c0_22, %c0_23, %c0_24] : memref<1x3x2x8x8x2xf32, #tpu.memory_space<vmem>>, vector<1x3x1x8x8x2xf32>
    %23 = vector.shape_cast %22 : vector<1x3x1x8x8x2xf32> to vector<3x8x8x2xf32>
    %24 = vector.shape_cast %23 : vector<3x8x8x2xf32> to vector<192x2xf32>
    %25 = arith.truncf %24 : vector<192x2xf32> to vector<192x2xbf16>
    %cst_25 = arith.constant dense<0.000000e+00> : vector<16x2xf32>
    %26 = tpu.matmul %0, %25, %cst_25 {dimension_numbers = #tpu.dot_dimension_numbers<[1], [0], [0], [1], [0, 0, 1, 1], [], []>} : vector<16x192xbf16>, vector<192x2xbf16>, vector<16x2xf32> -> vector<16x2xf32>
    %27 = vector.broadcast %1 : vector<16x1xf32> to vector<16x2xf32>
    %28 = arith.addf %26, %27 : vector<16x2xf32>
    %29 = math.tanh %28 : vector<16x2xf32>
    %30 = arith.truncf %29 : vector<16x2xf32> to vector<16x2xbf16>
    %cst_26 = arith.constant dense<0.000000e+00> : vector<192x2xf32>
    %31 = tpu.matmul %2, %30, %cst_26 {dimension_numbers = #tpu.dot_dimension_numbers<[1], [0], [0], [1], [0, 0, 1, 1], [], []>} : vector<192x16xbf16>, vector<16x2xbf16>, vector<192x2xf32> -> vector<192x2xf32>
    %32 = vector.broadcast %3 : vector<192x1xf32> to vector<192x2xf32>
    %33 = arith.addf %31, %32 : vector<192x2xf32>
    %34 = vector.shape_cast %33 : vector<192x2xf32> to vector<3x8x8x2xf32>
    %35 = arith.truncf %34 : vector<3x8x8x2xf32> to vector<3x8x8x2xbf16>
    %36 = math.tanh %35 : vector<3x8x8x2xbf16>
    %c0_27 = arith.constant 0 : index
    %c0_28 = arith.constant 0 : index
    %c1_29 = arith.constant 1 : index
    %c0_30 = arith.constant 0 : index
    %c0_31 = arith.constant 0 : index
    %c0_32 = arith.constant 0 : index
    %37 = vector.load %arg7[%c0_27, %c0_28, %c1_29, %c0_30, %c0_31, %c0_32] : memref<1x3x2x8x8x2xbf16, #tpu.memory_space<vmem>>, vector<1x3x1x8x8x2xbf16>
    %38 = vector.shape_cast %37 : vector<1x3x1x8x8x2xbf16> to vector<3x8x8x2xbf16>
    %39 = vector.shape_cast %36 : vector<3x8x8x2xbf16> to vector<1x3x1x8x8x2xbf16>
    tpu.vector_store %arg7[%c0_27, %c0_28, %c1_29, %c0_30, %c0_31, %c0_32], %39 {strides = array<i32>} : memref<1x3x2x8x8x2xbf16, #tpu.memory_space<vmem>>, vector<1x3x1x8x8x2xbf16>,
    return
  }
  func.func @transform_0(%arg0: i32, %arg1: i32) -> (i32, i32, i32, i32, i32, i32) {
    %c0_i32 = arith.constant 0 : i32
    %c0_i32_0 = arith.constant 0 : i32
    %c0_i32_1 = arith.constant 0 : i32
    %c0_i32_2 = arith.constant 0 : i32
    %c0_i32_3 = arith.constant 0 : i32
    return %arg0, %c0_i32, %arg1, %c0_i32_0, %c0_i32_1, %c0_i32_2 : i32, i32, i32, i32, i32, i32
  }
  func.func @transform_1(%arg0: i32, %arg1: i32) -> (i32, i32) {
    %c0_i32 = arith.constant 0 : i32
    %c0_i32_0 = arith.constant 0 : i32
    %c0_i32_1 = arith.constant 0 : i32
    return %c0_i32, %c0_i32_0 : i32, i32
  }
  func.func @transform_2(%arg0: i32, %arg1: i32) -> (i32, i32) {
    %c0_i32 = arith.constant 0 : i32
    %c0_i32_0 = arith.constant 0 : i32
    %c0_i32_1 = arith.constant 0 : i32
    return %c0_i32, %c0_i32_0 : i32, i32
  }
  func.func @transform_3(%arg0: i32, %arg1: i32) -> (i32, i32) {
    %c0_i32 = arith.constant 0 : i32
    %c0_i32_0 = arith.constant 0 : i32
    %c0_i32_1 = arith.constant 0 : i32
    return %c0_i32, %c0_i32_0 : i32, i32
  }
  func.func @transform_4(%arg0: i32, %arg1: i32) -> (i32, i32) {
    %c0_i32 = arith.constant 0 : i32
    %c0_i32_0 = arith.constant 0 : i32
    %c0_i32_1 = arith.constant 0 : i32
    return %c0_i32, %c0_i32_0 : i32, i32
  }
  func.func @transform_5(%arg0: i32, %arg1: i32) -> (i32, i32, i32, i32, i32, i32) {
    %c0_i32 = arith.constant 0 : i32
    %c0_i32_0 = arith.constant 0 : i32
    %c0_i32_1 = arith.constant 0 : i32
    %c0_i32_2 = arith.constant 0 : i32
    %c0_i32_3 = arith.constant 0 : i32
    return %arg0, %c0_i32, %arg1, %c0_i32_0, %c0_i32_1, %c0_i32_2 : i32, i32, i32, i32, i32, i32
  }
}

</mosaic_0001>

<llo_original>
// kernel: cosmos_ci_forward.1
$region0: #{cosmos_ci_forward.1}
  #allocation0 [shape = 'u32[]', space=smem, size = 0x4, offset = 0x4, fixed_abs, tag = 'smem constant byte address 0x4 - core index']
  #allocation1 [shape = 'u32[144,128]{1,0:T(1,128)}', space=vmem, size = 0x12000, scoped, tag = 'internal scratch']
  %s0 = inlined_call_operand.vmem [shape: f32[2,3,2,8,8,2], index: 0, kind: input, shape index: {}]
  %s1 = inlined_call_operand.vmem [shape: bf16[16,192], index: 1, kind: input, shape index: {}]
  %s2 = inlined_call_operand.vmem [shape: f32[16,1], index: 2, kind: input, shape index: {}]
  %s3 = inlined_call_operand.vmem [shape: bf16[192,16], index: 3, kind: input, shape index: {}]
  %s4 = inlined_call_operand.vmem [shape: f32[192,1], index: 4, kind: input, shape index: {}]
  %s5 = inlined_call_operand.vmem [shape: bf16[2,3,2,8,8,2], index: 5, kind: output, shape index: {}]
  %s6 = sld [smem:[#allocation0]]
  $region53: #{cosmos_ci_forward.1} parent=0
    _
  %s8 = ssub.s32 1, %s6
  %s9 = scalar_select 0, %s8, %s6
  loop: start=0, step=1, limit=4
  $region2: #{cosmos_ci_forward.1} parent=0 // loop_pre_header
    _
  $region3: #{cosmos_ci_forward.1} parent=0 // loop_header
    %s11 = sphi 0, %s15
    %p12 = scmp.ge.s32.totalorder %s11, 4
    %s18 = sphi 0, %s30
    %s19 = sphi 0, %s26
    %s20 = sphi 0, %s18
    %s21 = sphi 0, %s19
    %s22 = sphi 0, %s20
    %s23 = sphi 0, %s21
    %s35 = sphi 0, %s37
    %s38 = sphi 0, %s35
    %s39 = sphi 0, %s38
    %s55 = sphi 0, %s39
    %s59 = sphi 0, %s59
    %s61 = sphi 0, %s59
    %s62 = sphi 0, %s61
    %s76 = sphi 0, %s62
    %s80 = sphi 0, %s80
    %s82 = sphi 0, %s80
    %s83 = sphi 0, %s82
    %s97 = sphi 0, %s83
    %s101 = sphi 0, %s101
    %s103 = sphi 0, %s101
    %s104 = sphi 0, %s103
    %s118 = sphi 0, %s104
    %s122 = sphi 0, %s122
    %s124 = sphi 0, %s122
    %s125 = sphi 0, %s124
    %s139 = sphi 0, %s125
    %s147 = sphi 0, %s149
    %s150 = sphi 0, %s147
    %s151 = sphi 0, %s150
    %s167 = sphi 0, %s151
  $region4: #{cosmos_ci_forward.1} parent=0 // loop_header_branch
    %14 = sbr.rel (%p12) target = $region8
  $region5: #{cosmos_ci_forward.1} parent=0 // loop_body
    %s16 = ssub.s32 %s11, 1
    %s17 = ssub.s32 %s11, 2
    %s24 = sadd.s32 1, %s19
    %p25 = scmp.ge.s32.totalorder %s24, 1
    %s26 = scalar_select %p25, 0, %s24
    %s27 = sadd.s32 1, %s18
    %s28 = scalar_select %p25, %s27, %s18
    %p29 = scmp.ge.s32.totalorder %s28, 2
    %s30 = scalar_select %p29, 0, %s28
    %s31 = ssub.s32 %s18, %s30
    %s32 = ssub.s32 %s19, %s26
    %s33 = sor.u32 %s31, %s32
    %p34 = scmp.eq.s32.totalorder %s33, 0
    %s36 = sadd.s32 %s35, 1
    %s37 = scalar_select %p34, %s35, %s36
    %p40 = pneg %p34
    %p41 = scmp.eq.s32.totalorder %s11, 1
    %p42 = por %p40, %p41
    %p43 = scmp.ne.s32.totalorder %s35, %s38
    %p44 = scmp.eq.s32.totalorder %s11, 0
    %p45 = por %p43, %p44
    %p46 = scmp.ne.s32.totalorder %s35, %s38
    %p47 = scmp.eq.s32.totalorder %s16, 1
    %p48 = por %p46, %p47
    %p49 = scmp.ne.s32.totalorder %s38, %s39
    %p50 = scmp.eq.s32.totalorder %s16, 0
    %p51 = por %p49, %p50
    %p52 = scmp.ne.s32.totalorder %s38, %s39
    %p53 = scmp.eq.s32.totalorder %s17, 1
    %p54 = por %p52, %p53
    %p56 = scmp.ne.s32.totalorder %s39, %s55
    %p57 = scmp.eq.s32.totalorder %s17, 0
    %p58 = por %p56, %p57
    %s60 = sadd.s32 %s59, 1
    %p63 = scmp.eq.s32.totalorder %s11, 1
    %p64 = scmp.ne.s32.totalorder %s59, %s61
    %p65 = scmp.eq.s32.totalorder %s11, 0
    %p66 = por %p64, %p65
    %p67 = scmp.ne.s32.totalorder %s59, %s61
    %p68 = scmp.eq.s32.totalorder %s16, 1
    %p69 = por %p67, %p68
    %p70 = scmp.ne.s32.totalorder %s61, %s62
    %p71 = scmp.eq.s32.totalorder %s16, 0
    %p72 = por %p70, %p71
    %p73 = scmp.ne.s32.totalorder %s61, %s62
    %p74 = scmp.eq.s32.totalorder %s17, 1
    %p75 = por %p73, %p74
    %p77 = scmp.ne.s32.totalorder %s62, %s76
    %p78 = scmp.eq.s32.totalorder %s17, 0
    %p79 = por %p77, %p78
    %s81 = sadd.s32 %s80, 1
    %p84 = scmp.eq.s32.totalorder %s11, 1
    %p85 = scmp.ne.s32.totalorder %s80, %s82
    %p86 = scmp.eq.s32.totalorder %s11, 0
    %p87 = por %p85, %p86
    %p88 = scmp.ne.s32.totalorder %s80, %s82
    %p89 = scmp.eq.s32.totalorder %s16, 1
    %p90 = por %p88, %p89
    %p91 = scmp.ne.s32.totalorder %s82, %s83
    %p92 = scmp.eq.s32.totalorder %s16, 0
    %p93 = por %p91, %p92
    %p94 = scmp.ne.s32.totalorder %s82, %s83
    %p95 = scmp.eq.s32.totalorder %s17, 1
    %p96 = por %p94, %p95
    %p98 = scmp.ne.s32.totalorder %s83, %s97
    %p99 = scmp.eq.s32.totalorder %s17, 0
    %p100 = por %p98, %p99
    %s102 = sadd.s32 %s101, 1
    %p105 = scmp.eq.s32.totalorder %s11, 1
    %p106 = scmp.ne.s32.totalorder %s101, %s103
    %p107 = scmp.eq.s32.totalorder %s11, 0
    %p108 = por %p106, %p107
    %p109 = scmp.ne.s32.totalorder %s101, %s103
    %p110 = scmp.eq.s32.totalorder %s16, 1
    %p111 = por %p109, %p110
    %p112 = scmp.ne.s32.totalorder %s103, %s104
    %p113 = scmp.eq.s32.totalorder %s16, 0
    %p114 = por %p112, %p113
    %p115 = scmp.ne.s32.totalorder %s103, %s104
    %p116 = scmp.eq.s32.totalorder %s17, 1
    %p117 = por %p115, %p116
    %p119 = scmp.ne.s32.totalorder %s104, %s118
    %p120 = scmp.eq.s32.totalorder %s17, 0
    %p121 = por %p119, %p120
    %s123 = sadd.s32 %s122, 1
    %p126 = scmp.eq.s32.totalorder %s11, 1
    %p127 = scmp.ne.s32.totalorder %s122, %s124
    %p128 = scmp.eq.s32.totalorder %s11, 0
    %p129 = por %p127, %p128
    %p130 = scmp.ne.s32.totalorder %s122, %s124
    %p131 = scmp.eq.s32.totalorder %s16, 1
    %p132 = por %p130, %p131
    %p133 = scmp.ne.s32.totalorder %s124, %s125
    %p134 = scmp.eq.s32.totalorder %s16, 0
    %p135 = por %p133, %p134
    %p136 = scmp.ne.s32.totalorder %s124, %s125
    %p137 = scmp.eq.s32.totalorder %s17, 1
    %p138 = por %p136, %p137
    %p140 = scmp.ne.s32.totalorder %s125, %s139
    %p141 = scmp.eq.s32.totalorder %s17, 0
    %p142 = por %p140, %p141
    %s143 = ssub.s32 %s18, %s30
    %s144 = ssub.s32 %s19, %s26
    %s145 = sor.u32 %s143, %s144
    %p146 = scmp.eq.s32.totalorder %s145, 0
    %s148 = sadd.s32 %s147, 1
    %s149 = scalar_select %p146, %s147, %s148
    %p152 = pneg %p146
    %p153 = scmp.eq.s32.totalorder %s11, 1
    %p154 = por %p152, %p153
    %p155 = scmp.ne.s32.totalorder %s147, %s150
    %p156 = scmp.eq.s32.totalorder %s11, 0
    %p157 = por %p155, %p156
    %p158 = scmp.ne.s32.totalorder %s147, %s150
    %p159 = scmp.eq.s32.totalorder %s16, 1
    %p160 = por %p158, %p159
    %p161 = scmp.ne.s32.totalorder %s150, %s151
    %p162 = scmp.eq.s32.totalorder %s16, 0
    %p163 = por %p161, %p162
    %p164 = scmp.ne.s32.totalorder %s150, %s151
    %p165 = scmp.eq.s32.totalorder %s17, 1
    %p166 = por %p164, %p165
    %p168 = scmp.ne.s32.totalorder %s151, %s167
    %p169 = scmp.eq.s32.totalorder %s17, 0
    %p170 = por %p168, %p169
    %p171 = scmp.le.s32.totalorder 1, %s11
    %p172 = scmp.lt.s32.totalorder %s11, 3
    %p173 = pnand %p171, %p172
    %p174 = pneg %p173
    // Predicated region
    $region9: #{cosmos_ci_forward.1} parent=5 // pred_check
      _
    $region10: #{cosmos_ci_forward.1} parent=5 // pred_check_branch
      %176 = sbr.rel (%p173) target = $region12
    $region11: #{cosmos_ci_forward.1} parent=5 // pred_region
      %s177 = ssub.s32 %s11, 1
      // Predicated region
      $region13: #{cosmos_ci_forward.1} parent=11 // pred_check
        %p178 = pneg %p72
      $region14: #{cosmos_ci_forward.1} parent=11 // pred_check_branch
        %180 = sbr.rel (%p178) target = $region16
      $region15: #{cosmos_ci_forward.1} parent=11 // pred_region
        _
      $region16: #{cosmos_ci_forward.1} parent=11 // pred_fallthru
        _
      // Predicated region
      $region17: #{cosmos_ci_forward.1} parent=11 // pred_check
        %p181 = pneg %p93
      $region18: #{cosmos_ci_forward.1} parent=11 // pred_check_branch
        %183 = sbr.rel (%p181) target = $region20
      $region19: #{cosmos_ci_forward.1} parent=11 // pred_region
        _
      $region20: #{cosmos_ci_forward.1} parent=11 // pred_fallthru
        _
      // Predicated region
      $region21: #{cosmos_ci_forward.1} parent=11 // pred_check
        %p184 = pneg %p114
      $region22: #{cosmos_ci_forward.1} parent=11 // pred_check_branch
        %186 = sbr.rel (%p184) target = $region24
      $region23: #{cosmos_ci_forward.1} parent=11 // pred_region
        _
      $region24: #{cosmos_ci_forward.1} parent=11 // pred_fallthru
        _
      // Predicated region
      $region25: #{cosmos_ci_forward.1} parent=11 // pred_check
        %p187 = pneg %p135
      $region26: #{cosmos_ci_forward.1} parent=11 // pred_check_branch
        %189 = sbr.rel (%p187) target = $region28
      $region27: #{cosmos_ci_forward.1} parent=11 // pred_region
        _
      $region28: #{cosmos_ci_forward.1} parent=11 // pred_fallthru
        _
    $region12: #{cosmos_ci_forward.1} parent=5 // pred_fallthru
      _
    %p190 = scmp.lt.s32.totalorder %s11, 2
    // Predicated region
    $region29: #{cosmos_ci_forward.1} parent=5 // pred_check
      %p191 = pneg %p190
    $region30: #{cosmos_ci_forward.1} parent=5 // pred_check_branch
      %193 = sbr.rel (%p191) target = $region32
    $region31: #{cosmos_ci_forward.1} parent=5 // pred_region
      // Predicated region
      $region33: #{cosmos_ci_forward.1} parent=31 // pred_check
        %p194 = pneg %p45
      $region34: #{cosmos_ci_forward.1} parent=31 // pred_check_branch
        %196 = sbr.rel (%p194) target = $region36
      $region35: #{cosmos_ci_forward.1} parent=31 // pred_region
        %s197 = smul.u32 2, %s19
        %p198 = scmp.lt.s32.totalorder %s18, 1
        %s199 = scalar_select %p198, %s18, 1
        %p200 = scmp.lt.s32.totalorder %s197, 1
        %s201 = scalar_select %p200, %s197, 1
        %s202 = smul.addr %s201, 8
        %s203 = smul.addr %s199, 48
        %s204 = sadd.s32 %s202, %s203
        %s205 = smul.addr %s204, 8
        %s206 = scalar_lea.vmem %s0, %s205
        %s207 = smul.u32 2, %s19
      $region36: #{cosmos_ci_forward.1} parent=31 // pred_fallthru
        _
    $region32: #{cosmos_ci_forward.1} parent=5 // pred_fallthru
      _
    %p208 = scmp.le.s32.totalorder 1, %s11
    %p209 = scmp.lt.s32.totalorder %s11, 3
    %p210 = pnand %p208, %p209
    %p211 = pneg %p210
    // Predicated region
    $region37: #{cosmos_ci_forward.1} parent=5 // pred_check
      _
    $region38: #{cosmos_ci_forward.1} parent=5 // pred_check_branch
      %213 = sbr.rel (%p210) target = $region40
    $region39: #{cosmos_ci_forward.1} parent=5 // pred_region
      %s214 = ssub.s32 %s11, 1
      %s215 = smul.u32 2, %s21
      %p216 = scmp.lt.s32.totalorder %s20, 1
      %s217 = scalar_select %p216, %s20, 1
      %p218 = scmp.lt.s32.totalorder %s215, 1
      %s219 = scalar_select %p218, %s215, 1
      %s220 = smul.addr %s219, 8
      %s221 = smul.addr %s217, 48
      %s222 = sadd.s32 %s220, %s221
      %s223 = smul.addr %s222, 8
      %s224 = scalar_lea.vmem %s0, %s223
      %p225 = pneg %p51
      %p226 = pneg %p48
      %p227 = pneg %p72
      %p228 = pneg %p69
      %p229 = pneg %p93
      %p230 = pneg %p90
      %p231 = pneg %p114
      %p232 = pneg %p111
      %p233 = pneg %p135
      %p234 = pneg %p132
      %p235 = pneg %p163
      %p236 = pneg %p160
      %s237 = smul.u32 2, %s21
      %p238 = scmp.lt.s32.totalorder %s20, 1
      %s239 = scalar_select %p238, %s20, 1
      %p240 = scmp.lt.s32.totalorder %s237, 1
      %s241 = scalar_select %p240, %s237, 1
      %s242 = smul.addr %s241, 8
      %s243 = smul.addr %s239, 48
      %s244 = sadd.s32 %s242, %s243
      %s245 = smul.addr %s244, 4
      %s246 = scalar_lea.vmem %s5, %s245
      %s247 = smul.u32 2, %s21
      %p248 = scmp.lt.s32.totalorder %s20, 1
      %s249 = scalar_select %p248, %s20, 1
      %p250 = scmp.lt.s32.totalorder %s247, 1
      %s251 = scalar_select %p250, %s247, 1
      %s252 = smul.addr %s251, 8
      %s253 = smul.addr %s249, 48
      %s254 = sadd.s32 %s252, %s253
      %s255 = smul.addr %s254, 8
      %s256 = scalar_lea.vmem %s0, %s255
      %s257 = smul.u32 2, %s21
      %s258 = smul.u32 2, %s21
      %p259 = scmp.lt.s32.totalorder %s20, 1
      %s260 = scalar_select %p259, %s20, 1
      %p261 = scmp.lt.s32.totalorder %s258, 1
      %s262 = scalar_select %p261, %s258, 1
      %s263 = smul.addr %s262, 8
      %s264 = smul.addr %s260, 48
      %s265 = sadd.s32 %s263, %s264
      %s266 = smul.addr %s265, 4
      %s267 = scalar_lea.vmem %s5, %s266
      %s268 = smul.u32 2, %s21
      %v270 = vld [vmem:[%s1] sm:$0xff]
      %v271 = vld [vmem:[%s1 + $0x8] sm:$0xff]
      %v272 = vld [vmem:[%s2] sm:$0xff]
      %v273 = vld [vmem:[%s2 + $0x8] sm:$0xff]
      %v274 = vld [vmem:[%s3] sm:$0xf]
      %v275 = vld [vmem:[%s3 + $0x4] sm:$0xf]
      %v276 = vld [vmem:[%s3 + $0x8] sm:$0xf]
      %v277 = vld [vmem:[%s3 + $0xc] sm:$0xf]
      %v278 = vld [vmem:[%s3 + $0x10] sm:$0xf]
      %v279 = vld [vmem:[%s3 + $0x14] sm:$0xf]
      %v280 = vld [vmem:[%s3 + $0x18] sm:$0xf]
      %v281 = vld [vmem:[%s3 + $0x1c] sm:$0xf]
      %v282 = vld [vmem:[%s3 + $0x20] sm:$0xf]
      %v283 = vld [vmem:[%s3 + $0x24] sm:$0xf]
      %v284 = vld [vmem:[%s3 + $0x28] sm:$0xf]
      %v285 = vld [vmem:[%s3 + $0x2c] sm:$0xf]
      %v286 = vld [vmem:[%s3 + $0x30] sm:$0xf]
      %v287 = vld [vmem:[%s3 + $0x34] sm:$0xf]
      %v288 = vld [vmem:[%s3 + $0x38] sm:$0xf]
      %v289 = vld [vmem:[%s3 + $0x3c] sm:$0xf]
      %v290 = vld [vmem:[%s3 + $0x40] sm:$0xf]
      %v291 = vld [vmem:[%s3 + $0x44] sm:$0xf]
      %v292 = vld [vmem:[%s3 + $0x48] sm:$0xf]
      %v293 = vld [vmem:[%s3 + $0x4c] sm:$0xf]
      %v294 = vld [vmem:[%s3 + $0x50] sm:$0xf]
      %v295 = vld [vmem:[%s3 + $0x54] sm:$0xf]
      %v296 = vld [vmem:[%s3 + $0x58] sm:$0xf]
      %v297 = vld [vmem:[%s3 + $0x5c] sm:$0xf]
      %v298 = vld [vmem:[%s4] sm:$0xff]
      %v299 = vld [vmem:[%s4 + $0x8] sm:$0xff]
      %v300 = vld [vmem:[%s4 + $0x10] sm:$0xff]
      %v301 = vld [vmem:[%s4 + $0x18] sm:$0xff]
      %v302 = vld [vmem:[%s4 + $0x20] sm:$0xff]
      %v303 = vld [vmem:[%s4 + $0x28] sm:$0xff]
      %v304 = vld [vmem:[%s4 + $0x30] sm:$0xff]
      %v305 = vld [vmem:[%s4 + $0x38] sm:$0xff]
      %v306 = vld [vmem:[%s4 + $0x40] sm:$0xff]
      %v307 = vld [vmem:[%s4 + $0x48] sm:$0xff]
      %v308 = vld [vmem:[%s4 + $0x50] sm:$0xff]
      %v309 = vld [vmem:[%s4 + $0x58] sm:$0xff]
      %v310 = vld [vmem:[%s4 + $0x60] sm:$0xff]
      %v311 = vld [vmem:[%s4 + $0x68] sm:$0xff]
      %v312 = vld [vmem:[%s4 + $0x70] sm:$0xff]
      %v313 = vld [vmem:[%s4 + $0x78] sm:$0xff]
      %v314 = vld [vmem:[%s4 + $0x80] sm:$0xff]
      %v315 = vld [vmem:[%s4 + $0x88] sm:$0xff]
      %v316 = vld [vmem:[%s4 + $0x90] sm:$0xff]
      %v317 = vld [vmem:[%s4 + $0x98] sm:$0xff]
      %v318 = vld [vmem:[%s4 + $0xa0] sm:$0xff]
      %v319 = vld [vmem:[%s4 + $0xa8] sm:$0xff]
      %v320 = vld [vmem:[%s4 + $0xb0] sm:$0xff]
      %v321 = vld [vmem:[%s4 + $0xb8] sm:$0xff]
      %v322 = vld [vmem:[%s256] sm:$0xff]
      %v323 = vld [vmem:[%s256 + $0x8] sm:$0xff]
      %v324 = vld [vmem:[%s256 + $0x10] sm:$0xff]
      %v325 = vld [vmem:[%s256 + $0x18] sm:$0xff]
      %v326 = vld [vmem:[%s256 + $0x20] sm:$0xff]
      %v327 = vld [vmem:[%s256 + $0x28] sm:$0xff]
      %v328 = vld [vmem:[%s256 + $0x30] sm:$0xff]
      %v329 = vld [vmem:[%s256 + $0x38] sm:$0xff]
      %v330 = vld [vmem:[%s256 + $0x80] sm:$0xff]
      %v331 = vld [vmem:[%s256 + $0x88] sm:$0xff]
      %v332 = vld [vmem:[%s256 + $0x90] sm:$0xff]
      %v333 = vld [vmem:[%s256 + $0x98] sm:$0xff]
      %v334 = vld [vmem:[%s256 + $0xa0] sm:$0xff]
      %v335 = vld [vmem:[%s256 + $0xa8] sm:$0xff]
      %v336 = vld [vmem:[%s256 + $0xb0] sm:$0xff]
      %v337 = vld [vmem:[%s256 + $0xb8] sm:$0xff]
      %v338 = vld [vmem:[%s256 + $0x100] sm:$0xff]
      %v339 = vld [vmem:[%s256 + $0x108] sm:$0xff]
      %v340 = vld [vmem:[%s256 + $0x110] sm:$0xff]
      %v341 = vld [vmem:[%s256 + $0x118] sm:$0xff]
      %v342 = vld [vmem:[%s256 + $0x120] sm:$0xff]
      %v343 = vld [vmem:[%s256 + $0x128] sm:$0xff]
      %v344 = vld [vmem:[%s256 + $0x130] sm:$0xff]
      %v345 = vld [vmem:[%s256 + $0x138] sm:$0xff]
      %v346 = vpack.c.bf16 %v323, %v322
      %v347 = vpack.c.bf16 %v325, %v324
      %v348 = vpack.c.bf16 %v327, %v326
      %v349 = vpack.c.bf16 %v329, %v328
      %v350 = vpack.c.bf16 %v331, %v330
      %v351 = vpack.c.bf16 %v333, %v332
      %v352 = vpack.c.bf16 %v335, %v334
      %v353 = vpack.c.bf16 %v337, %v336
      %v354 = vpack.c.bf16 %v339, %v338
      %v355 = vpack.c.bf16 %v341, %v340
      %v356 = vpack.c.bf16 %v343, %v342
      %v357 = vpack.c.bf16 %v345, %v344
      %359 = vset.pattern.permute.xlu0 0
      %360 = vperm.xlu0 %359, %v272
      %v361 = vpop.permute.xlu0 %360
      %364 = vset.pattern.permute.xlu0 0
      %365 = vperm.xlu0 %364, %v273
      %v366 = vpop.permute.xlu0 %365
      %v370 = vunpack.c.l.b16 %v270
      %v371 = vunpack.c.h.b16 %v270
      %v372 = vunpack.c.l.b16 %v271
      %v373 = vunpack.c.h.b16 %v271
      %v374 = vpack.c.b16 %v372, %v370
      %v375 = vpack.c.b16 %v373, %v371
      %vm377 = vcmask 523264
      %v379 = vsel %vm377, %v375, 0
      %381 = vmatprep.subr.bf16.mxu0 0
      %382 = vmatpush1.bf16.msra.mxu0 %v346
      %383 = vmatprep.subr.bf16.mxu0 0
      %384 = vmatpush1.bf16.msra.mxu0 %v347
      %385 = vmatprep.subr.bf16.mxu0 0
      %386 = vmatpush1.bf16.msra.mxu0 %v348
      %387 = vmatprep.subr.bf16.mxu0 0
      %388 = vmatpush1.bf16.msra.mxu0 %v349
      %389 = vmatprep.subr.bf16.mxu0 0
      %390 = vmatpush1.bf16.msra.mxu0 %v350
      %391 = vmatprep.subr.bf16.mxu0 0
      %392 = vmatpush1.bf16.msra.mxu0 %v351
      %393 = vmatprep.subr.bf16.mxu0 0
      %394 = vmatpush1.bf16.msra.mxu0 %v352
      %395 = vmatprep.subr.bf16.mxu0 0
      %396 = vmatpush1.bf16.msra.mxu0 %v353
      %397 = vmatprep.subr.bf16.mxu0 0
      %398 = vmatpush1.bf16.msra.mxu0 %v354
      %399 = vmatprep.subr.bf16.mxu0 0
      %400 = vmatpush1.bf16.msra.mxu0 %v355
      %401 = vmatprep.subr.bf16.mxu0 0
      %402 = vmatpush1.bf16.msra.mxu0 %v356
      %403 = vmatprep.subr.bf16.mxu0 0
      %404 = vmatpush1.bf16.msra.mxu0 %v357
      %405 = vmatprep.subr.bf16.mxu0 0
      %406 = vmatpush1.bf16.msra.mxu0 0
      %407 = vmatprep.subr.bf16.mxu0 0
      %408 = vmatpush1.bf16.msra.mxu0 0
      %409 = vmatprep.subr.bf16.mxu0 0
      %410 = vmatpush1.bf16.msra.mxu0 0
      %411 = vmatprep.subr.bf16.mxu0 0
      %412 = vmatpush1.bf16.msra.mxu0 0
      %413 = vmatprep.mubr.bf16.mxu0 %v379
      %414 = vmatmul.mubr.bf16.gmra.mrb[0].mxu0 %v374
      %v415 = vpop.f32.mrb[0].mxu0
      %v416 = vadd.f32 %v361, %v415
      %v417 = vpop.f32.mrb[0].mxu0
      %v418 = vpop.f32.mrb[0].mxu0
      %v419 = vadd.f32 %v366, %v418
      %v420 = vpop.f32.mrb[0].mxu0
      %421 = vdwg.mxu0
      %v422 = vtanh.pop %v416
      %v423 = vtanh.pop %v419
      %v424 = vpack.c.bf16 %v423, %v422
      %426 = vset.pattern.permute.xlu0 0
      %427 = vperm.xlu0 %426, %v298
      %v428 = vpop.permute.xlu0 %427
      %431 = vset.pattern.permute.xlu0 0
      %432 = vperm.xlu0 %431, %v299
      %v433 = vpop.permute.xlu0 %432
      %436 = vset.pattern.permute.xlu0 0
      %437 = vperm.xlu0 %436, %v300
      %v438 = vpop.permute.xlu0 %437
      %441 = vset.pattern.permute.xlu0 0
      %442 = vperm.xlu0 %441, %v301
      %v443 = vpop.permute.xlu0 %442
      %446 = vset.pattern.permute.xlu0 0
      %447 = vperm.xlu0 %446, %v302
      %v448 = vpop.permute.xlu0 %447
      %451 = vset.pattern.permute.xlu0 0
      %452 = vperm.xlu0 %451, %v303
      %v453 = vpop.permute.xlu0 %452
      %456 = vset.pattern.permute.xlu0 0
      %457 = vperm.xlu0 %456, %v304
      %v458 = vpop.permute.xlu0 %457
      %461 = vset.pattern.permute.xlu0 0
      %462 = vperm.xlu0 %461, %v305
      %v463 = vpop.permute.xlu0 %462
      %466 = vset.pattern.permute.xlu0 0
      %467 = vperm.xlu0 %466, %v306
      %v468 = vpop.permute.xlu0 %467
      %471 = vset.pattern.permute.xlu0 0
      %472 = vperm.xlu0 %471, %v307
      %v473 = vpop.permute.xlu0 %472
      %476 = vset.pattern.permute.xlu0 0
      %477 = vperm.xlu0 %476, %v308
      %v478 = vpop.permute.xlu0 %477
      %481 = vset.pattern.permute.xlu0 0
      %482 = vperm.xlu0 %481, %v309
      %v483 = vpop.permute.xlu0 %482
      %486 = vset.pattern.permute.xlu0 0
      %487 = vperm.xlu0 %486, %v310
      %v488 = vpop.permute.xlu0 %487
      %491 = vset.pattern.permute.xlu0 0
      %492 = vperm.xlu0 %491, %v311
      %v493 = vpop.permute.xlu0 %492
      %496 = vset.pattern.permute.xlu0 0
      %497 = vperm.xlu0 %496, %v312
      %v498 = vpop.permute.xlu0 %497
      %501 = vset.pattern.permute.xlu0 0
      %502 = vperm.xlu0 %501, %v313
      %v503 = vpop.permute.xlu0 %502
      %506 = vset.pattern.permute.xlu0 0
      %507 = vperm.xlu0 %506, %v314
      %v508 = vpop.permute.xlu0 %507
      %511 = vset.pattern.permute.xlu0 0
      %512 = vperm.xlu0 %511, %v315
      %v513 = vpop.permute.xlu0 %512
      %516 = vset.pattern.permute.xlu0 0
      %517 = vperm.xlu0 %516, %v316
      %v518 = vpop.permute.xlu0 %517
      %521 = vset.pattern.permute.xlu0 0
      %522 = vperm.xlu0 %521, %v317
      %v523 = vpop.permute.xlu0 %522
      %526 = vset.pattern.permute.xlu0 0
      %527 = vperm.xlu0 %526, %v318
      %v528 = vpop.permute.xlu0 %527
      %531 = vset.pattern.permute.xlu0 0
      %532 = vperm.xlu0 %531, %v319
      %v533 = vpop.permute.xlu0 %532
      %536 = vset.pattern.permute.xlu0 0
      %537 = vperm.xlu0 %536, %v320
      %v538 = vpop.permute.xlu0 %537
      %541 = vset.pattern.permute.xlu0 0
      %542 = vperm.xlu0 %541, %v321
      %v543 = vpop.permute.xlu0 %542
      %v569 = vunpack.c.l.b16 %v274
      %v570 = vunpack.c.l.b16 %v275
      %v571 = vunpack.c.l.b16 %v276
      %v572 = vunpack.c.l.b16 %v277
      %v573 = vunpack.c.l.b16 %v278
      %v574 = vunpack.c.l.b16 %v279
      %v575 = vunpack.c.l.b16 %v280
      %v576 = vunpack.c.l.b16 %v281
      %v577 = vunpack.c.l.b16 %v282
      %v578 = vunpack.c.l.b16 %v283
      %v579 = vunpack.c.l.b16 %v284
      %v580 = vunpack.c.l.b16 %v285
      %v581 = vunpack.c.l.b16 %v286
      %v582 = vunpack.c.l.b16 %v287
      %v583 = vunpack.c.l.b16 %v288
      %v584 = vunpack.c.l.b16 %v289
      %v585 = vunpack.c.l.b16 %v290
      %v586 = vunpack.c.l.b16 %v291
      %v587 = vunpack.c.l.b16 %v292
      %v588 = vunpack.c.l.b16 %v293
      %v589 = vunpack.c.l.b16 %v294
      %v590 = vunpack.c.l.b16 %v295
      %v591 = vunpack.c.l.b16 %v296
      %v592 = vunpack.c.l.b16 %v297
      %v593 = vpack.c.b16 %v570, %v569
      %v594 = vpack.c.b16 %v572, %v571
      %v595 = vpack.c.b16 %v574, %v573
      %v596 = vpack.c.b16 %v576, %v575
      %v597 = vpack.c.b16 %v578, %v577
      %v598 = vpack.c.b16 %v580, %v579
      %v599 = vpack.c.b16 %v582, %v581
      %v600 = vpack.c.b16 %v584, %v583
      %v601 = vpack.c.b16 %v586, %v585
      %v602 = vpack.c.b16 %v588, %v587
      %v603 = vpack.c.b16 %v590, %v589
      %v604 = vpack.c.b16 %v592, %v591
      %vm605 = vcmask 130048
      %v607 = vsel %vm605, %v593, 0
      %v610 = vsel %vm605, %v594, 0
      %v613 = vsel %vm605, %v595, 0
      %v616 = vsel %vm605, %v596, 0
      %v619 = vsel %vm605, %v597, 0
      %v622 = vsel %vm605, %v598, 0
      %v625 = vsel %vm605, %v599, 0
      %v628 = vsel %vm605, %v600, 0
      %v631 = vsel %vm605, %v601, 0
      %v634 = vsel %vm605, %v602, 0
      %v637 = vsel %vm605, %v603, 0
      %v640 = vsel %vm605, %v604, 0
      %642 = vmatprep.subr.bf16.mxu0 0
      %643 = vmatpush1.bf16.msra.mxu0 %v424
      %644 = vmatprep.subr.bf16.mxu0 0
      %645 = vmatpush1.bf16.msra.mxu0 0
      %646 = vmatprep.subr.bf16.mxu0 0
      %647 = vmatpush1.bf16.msra.mxu0 0
      %648 = vmatprep.subr.bf16.mxu0 0
      %649 = vmatpush1.bf16.msra.mxu0 0
      %650 = vmatprep.subr.bf16.mxu0 0
      %651 = vmatpush1.bf16.msra.mxu0 0
      %652 = vmatprep.subr.bf16.mxu0 0
      %653 = vmatpush1.bf16.msra.mxu0 0
      %654 = vmatprep.subr.bf16.mxu0 0
      %655 = vmatpush1.bf16.msra.mxu0 0
      %656 = vmatprep.subr.bf16.mxu0 0
      %657 = vmatpush1.bf16.msra.mxu0 0
      %658 = vmatprep.subr.bf16.mxu0 0
      %659 = vmatpush1.bf16.msra.mxu0 0
      %660 = vmatprep.subr.bf16.mxu0 0
      %661 = vmatpush1.bf16.msra.mxu0 0
      %662 = vmatprep.subr.bf16.mxu0 0
      %663 = vmatpush1.bf16.msra.mxu0 0
      %664 = vmatprep.subr.bf16.mxu0 0
      %665 = vmatpush1.bf16.msra.mxu0 0
      %666 = vmatprep.subr.bf16.mxu0 0
      %667 = vmatpush1.bf16.msra.mxu0 0
      %668 = vmatprep.subr.bf16.mxu0 0
      %669 = vmatpush1.bf16.msra.mxu0 0
      %670 = vmatprep.subr.bf16.mxu0 0
      %671 = vmatpush1.bf16.msra.mxu0 0
      %672 = vmatprep.subr.bf16.mxu0 0
      %673 = vmatpush1.bf16.msra.mxu0 0
      %674 = vmatprep.mubr.bf16.mxu0 0
      %675 = vmatmul.mubr.bf16.gmra.mrb[0].mxu0 %v607
      %v676 = vpop.f32.mrb[0].mxu0
      %v677 = vadd.f32 %v428, %v676
      %v678 = vpop.f32.mrb[0].mxu0
      %v679 = vpop.f32.mrb[0].mxu0
      %v680 = vadd.f32 %v433, %v679
      %v681 = vpop.f32.mrb[0].mxu0
      %682 = vmatprep.mubr.bf16.mxu0 0
      %683 = vmatmul.mubr.bf16.gmra.mrb[0].mxu0 %v610
      %v684 = vpop.f32.mrb[0].mxu0
      %v685 = vadd.f32 %v438, %v684
      %v686 = vpop.f32.mrb[0].mxu0
      %v687 = vpop.f32.mrb[0].mxu0
      %v688 = vadd.f32 %v443, %v687
      %v689 = vpop.f32.mrb[0].mxu0
      %690 = vmatprep.mubr.bf16.mxu0 0
      %691 = vmatmul.mubr.bf16.gmra.mrb[0].mxu0 %v613
      %v692 = vpop.f32.mrb[0].mxu0
      %v693 = vadd.f32 %v448, %v692
      %v694 = vpop.f32.mrb[0].mxu0
      %v695 = vpop.f32.mrb[0].mxu0
      %v696 = vadd.f32 %v453, %v695
      %v697 = vpop.f32.mrb[0].mxu0
      %698 = vmatprep.mubr.bf16.mxu0 0
      %699 = vmatmul.mubr.bf16.gmra.mrb[0].mxu0 %v616
      %v700 = vpop.f32.mrb[0].mxu0
      %v701 = vadd.f32 %v458, %v700
      %v702 = vpop.f32.mrb[0].mxu0
      %v703 = vpop.f32.mrb[0].mxu0
      %v704 = vadd.f32 %v463, %v703
      %v705 = vpop.f32.mrb[0].mxu0
      %706 = vmatprep.mubr.bf16.mxu0 0
      %707 = vmatmul.mubr.bf16.gmra.mrb[0].mxu0 %v619
      %v708 = vpop.f32.mrb[0].mxu0
      %v709 = vadd.f32 %v468, %v708
      %v710 = vpop.f32.mrb[0].mxu0
      %v711 = vpop.f32.mrb[0].mxu0
      %v712 = vadd.f32 %v473, %v711
      %v713 = vpop.f32.mrb[0].mxu0
      %714 = vmatprep.mubr.bf16.mxu0 0
      %715 = vmatmul.mubr.bf16.gmra.mrb[0].mxu0 %v622
      %v716 = vpop.f32.mrb[0].mxu0
      %v717 = vadd.f32 %v478, %v716
      %v718 = vpop.f32.mrb[0].mxu0
      %v719 = vpop.f32.mrb[0].mxu0
      %v720 = vadd.f32 %v483, %v719
      %v721 = vpop.f32.mrb[0].mxu0
      %722 = vmatprep.mubr.bf16.mxu0 0
      %723 = vmatmul.mubr.bf16.gmra.mrb[0].mxu0 %v625
      %v724 = vpop.f32.mrb[0].mxu0
      %v725 = vadd.f32 %v488, %v724
      %v726 = vpop.f32.mrb[0].mxu0
      %v727 = vpop.f32.mrb[0].mxu0
      %v728 = vadd.f32 %v493, %v727
      %v729 = vpop.f32.mrb[0].mxu0
      %730 = vmatprep.mubr.bf16.mxu0 0
      %731 = vmatmul.mubr.bf16.gmra.mrb[0].mxu0 %v628
      %v732 = vpop.f32.mrb[0].mxu0
      %v733 = vadd.f32 %v498, %v732
      %v734 = vpop.f32.mrb[0].mxu0
      %v735 = vpop.f32.mrb[0].mxu0
      %v736 = vadd.f32 %v503, %v735
      %v737 = vpop.f32.mrb[0].mxu0
      %738 = vmatprep.mubr.bf16.mxu0 0
      %739 = vmatmul.mubr.bf16.gmra.mrb[0].mxu0 %v631
      %v740 = vpop.f32.mrb[0].mxu0
      %v741 = vadd.f32 %v508, %v740
      %v742 = vpop.f32.mrb[0].mxu0
      %v743 = vpop.f32.mrb[0].mxu0
      %v744 = vadd.f32 %v513, %v743
      %v745 = vpop.f32.mrb[0].mxu0
      %746 = vmatprep.mubr.bf16.mxu0 0
      %747 = vmatmul.mubr.bf16.gmra.mrb[0].mxu0 %v634
      %v748 = vpop.f32.mrb[0].mxu0
      %v749 = vadd.f32 %v518, %v748
      %v750 = vpop.f32.mrb[0].mxu0
      %v751 = vpop.f32.mrb[0].mxu0
      %v752 = vadd.f32 %v523, %v751
      %v753 = vpop.f32.mrb[0].mxu0
      %754 = vmatprep.mubr.bf16.mxu0 0
      %755 = vmatmul.mubr.bf16.gmra.mrb[0].mxu0 %v637
      %v756 = vpop.f32.mrb[0].mxu0
      %v757 = vadd.f32 %v528, %v756
      %v758 = vpop.f32.mrb[0].mxu0
      %v759 = vpop.f32.mrb[0].mxu0
      %v760 = vadd.f32 %v533, %v759
      %v761 = vpop.f32.mrb[0].mxu0
      %762 = vmatprep.mubr.bf16.mxu0 0
      %763 = vmatmul.mubr.bf16.gmra.mrb[0].mxu0 %v640
      %v764 = vpop.f32.mrb[0].mxu0
      %v765 = vadd.f32 %v538, %v764
      %v766 = vpop.f32.mrb[0].mxu0
      %v767 = vpop.f32.mrb[0].mxu0
      %v768 = vadd.f32 %v543, %v767
      %v769 = vpop.f32.mrb[0].mxu0
      %770 = vdwg.mxu0
      %v771 = vpack.c.bf16 %v677, %v677
      %v772 = vpack.c.bf16 %v680, %v680
      %v773 = vpack.c.bf16 %v685, %v685
      %v774 = vpack.c.bf16 %v688, %v688
      %v775 = vpack.c.bf16 %v693, %v693
      %v776 = vpack.c.bf16 %v696, %v696
      %v777 = vpack.c.bf16 %v701, %v701
      %v778 = vpack.c.bf16 %v704, %v704
      %v779 = vpack.c.bf16 %v709, %v709
      %v780 = vpack.c.bf16 %v712, %v712
      %v781 = vpack.c.bf16 %v717, %v717
      %v782 = vpack.c.bf16 %v720, %v720
      %v783 = vpack.c.bf16 %v725, %v725
      %v784 = vpack.c.bf16 %v728, %v728
      %v785 = vpack.c.bf16 %v733, %v733
      %v786 = vpack.c.bf16 %v736, %v736
      %v787 = vpack.c.bf16 %v741, %v741
      %v788 = vpack.c.bf16 %v744, %v744
      %v789 = vpack.c.bf16 %v749, %v749
      %v790 = vpack.c.bf16 %v752, %v752
      %v791 = vpack.c.bf16 %v757, %v757
      %v792 = vpack.c.bf16 %v760, %v760
      %v793 = vpack.c.bf16 %v765, %v765
      %v794 = vpack.c.bf16 %v768, %v768
      %v795 = vtanh.bf16.pop %v771
      %v796 = vtanh.bf16.pop %v772
      %v797 = vtanh.bf16.pop %v773
      %v798 = vtanh.bf16.pop %v774
      %v799 = vtanh.bf16.pop %v775
      %v800 = vtanh.bf16.pop %v776
      %v801 = vtanh.bf16.pop %v777
      %v802 = vtanh.bf16.pop %v778
      %v803 = vtanh.bf16.pop %v779
      %v804 = vtanh.bf16.pop %v780
      %v805 = vtanh.bf16.pop %v781
      %v806 = vtanh.bf16.pop %v782
      %v807 = vtanh.bf16.pop %v783
      %v808 = vtanh.bf16.pop %v784
      %v809 = vtanh.bf16.pop %v785
      %v810 = vtanh.bf16.pop %v786
      %v811 = vtanh.bf16.pop %v787
      %v812 = vtanh.bf16.pop %v788
      %v813 = vtanh.bf16.pop %v789
      %v814 = vtanh.bf16.pop %v790
      %v815 = vtanh.bf16.pop %v791
      %v816 = vtanh.bf16.pop %v792
      %v817 = vtanh.bf16.pop %v793
      %v818 = vtanh.bf16.pop %v794
      %vm819 = vcmask 11264
      %820 = vst.msk [vmem:[%s267] sm:$0xf] %vm819, %v795
      %821 = vst.msk [vmem:[%s267 + $0x4] sm:$0xf] %vm819, %v796
      %822 = vst.msk [vmem:[%s267 + $0x8] sm:$0xf] %vm819, %v797
      %823 = vst.msk [vmem:[%s267 + $0xc] sm:$0xf] %vm819, %v798
      %824 = vst.msk [vmem:[%s267 + $0x10] sm:$0xf] %vm819, %v799
      %825 = vst.msk [vmem:[%s267 + $0x14] sm:$0xf] %vm819, %v800
      %826 = vst.msk [vmem:[%s267 + $0x18] sm:$0xf] %vm819, %v801
      %827 = vst.msk [vmem:[%s267 + $0x1c] sm:$0xf] %vm819, %v802
      %828 = vst.msk [vmem:[%s267 + $0x40] sm:$0xf] %vm819, %v803
      %829 = vst.msk [vmem:[%s267 + $0x44] sm:$0xf] %vm819, %v804
      %830 = vst.msk [vmem:[%s267 + $0x48] sm:$0xf] %vm819, %v805
      %831 = vst.msk [vmem:[%s267 + $0x4c] sm:$0xf] %vm819, %v806
      %832 = vst.msk [vmem:[%s267 + $0x50] sm:$0xf] %vm819, %v807
      %833 = vst.msk [vmem:[%s267 + $0x54] sm:$0xf] %vm819, %v808
      %834 = vst.msk [vmem:[%s267 + $0x58] sm:$0xf] %vm819, %v809
      %835 = vst.msk [vmem:[%s267 + $0x5c] sm:$0xf] %vm819, %v810
      %836 = vst.msk [vmem:[%s267 + $0x80] sm:$0xf] %vm819, %v811
      %837 = vst.msk [vmem:[%s267 + $0x84] sm:$0xf] %vm819, %v812
      %838 = vst.msk [vmem:[%s267 + $0x88] sm:$0xf] %vm819, %v813
      %839 = vst.msk [vmem:[%s267 + $0x8c] sm:$0xf] %vm819, %v814
      %840 = vst.msk [vmem:[%s267 + $0x90] sm:$0xf] %vm819, %v815
      %841 = vst.msk [vmem:[%s267 + $0x94] sm:$0xf] %vm819, %v816
      %842 = vst.msk [vmem:[%s267 + $0x98] sm:$0xf] %vm819, %v817
      %843 = vst.msk [vmem:[%s267 + $0x9c] sm:$0xf] %vm819, %v818
      %s844 = scalar_lea.vmem %s256, 64
      %v845 = vld [vmem:[%s844] sm:$0xff]
      %v846 = vld [vmem:[%s844 + $0x8] sm:$0xff]
      %v847 = vld [vmem:[%s844 + $0x10] sm:$0xff]
      %v848 = vld [vmem:[%s844 + $0x18] sm:$0xff]
      %v849 = vld [vmem:[%s844 + $0x20] sm:$0xff]
      %v850 = vld [vmem:[%s844 + $0x28] sm:$0xff]
      %v851 = vld [vmem:[%s844 + $0x30] sm:$0xff]
      %v852 = vld [vmem:[%s844 + $0x38] sm:$0xff]
      %v853 = vld [vmem:[%s844 + $0x80] sm:$0xff]
      %v854 = vld [vmem:[%s844 + $0x88] sm:$0xff]
      %v855 = vld [vmem:[%s844 + $0x90] sm:$0xff]
      %v856 = vld [vmem:[%s844 + $0x98] sm:$0xff]
      %v857 = vld [vmem:[%s844 + $0xa0] sm:$0xff]
      %v858 = vld [vmem:[%s844 + $0xa8] sm:$0xff]
      %v859 = vld [vmem:[%s844 + $0xb0] sm:$0xff]
      %v860 = vld [vmem:[%s844 + $0xb8] sm:$0xff]
      %v861 = vld [vmem:[%s844 + $0x100] sm:$0xff]
      %v862 = vld [vmem:[%s844 + $0x108] sm:$0xff]
      %v863 = vld [vmem:[%s844 + $0x110] sm:$0xff]
      %v864 = vld [vmem:[%s844 + $0x118] sm:$0xff]
      %v865 = vld [vmem:[%s844 + $0x120] sm:$0xff]
      %v866 = vld [vmem:[%s844 + $0x128] sm:$0xff]
      %v867 = vld [vmem:[%s844 + $0x130] sm:$0xff]
      %v868 = vld [vmem:[%s844 + $0x138] sm:$0xff]
      %v869 = vpack.c.bf16 %v846, %v845
      %v870 = vpack.c.bf16 %v848, %v847
      %v871 = vpack.c.bf16 %v850, %v849
      %v872 = vpack.c.bf16 %v852, %v851
      %v873 = vpack.c.bf16 %v854, %v853
      %v874 = vpack.c.bf16 %v856, %v855
      %v875 = vpack.c.bf16 %v858, %v857
      %v876 = vpack.c.bf16 %v860, %v859
      %v877 = vpack.c.bf16 %v862, %v861
      %v878 = vpack.c.bf16 %v864, %v863
      %v879 = vpack.c.bf16 %v866, %v865
      %v880 = vpack.c.bf16 %v868, %v867
      %881 = vmatprep.subr.bf16.mxu0 0
      %882 = vmatpush1.bf16.msra.mxu0 %v869
      %883 = vmatprep.subr.bf16.mxu0 0
      %884 = vmatpush1.bf16.msra.mxu0 %v870
      %885 = vmatprep.subr.bf16.mxu0 0
      %886 = vmatpush1.bf16.msra.mxu0 %v871
      %887 = vmatprep.subr.bf16.mxu0 0
      %888 = vmatpush1.bf16.msra.mxu0 %v872
      %889 = vmatprep.subr.bf16.mxu0 0
      %890 = vmatpush1.bf16.msra.mxu0 %v873
      %891 = vmatprep.subr.bf16.mxu0 0
      %892 = vmatpush1.bf16.msra.mxu0 %v874
      %893 = vmatprep.subr.bf16.mxu0 0
      %894 = vmatpush1.bf16.msra.mxu0 %v875
      %895 = vmatprep.subr.bf16.mxu0 0
      %896 = vmatpush1.bf16.msra.mxu0 %v876
      %897 = vmatprep.subr.bf16.mxu0 0
      %898 = vmatpush1.bf16.msra.mxu0 %v877
      %899 = vmatprep.subr.bf16.mxu0 0
      %900 = vmatpush1.bf16.msra.mxu0 %v878
      %901 = vmatprep.subr.bf16.mxu0 0
      %902 = vmatpush1.bf16.msra.mxu0 %v879
      %903 = vmatprep.subr.bf16.mxu0 0
      %904 = vmatpush1.bf16.msra.mxu0 %v880
      %905 = vmatprep.subr.bf16.mxu0 0
      %906 = vmatpush1.bf16.msra.mxu0 0
      %907 = vmatprep.subr.bf16.mxu0 0
      %908 = vmatpush1.bf16.msra.mxu0 0
      %909 = vmatprep.subr.bf16.mxu0 0
      %910 = vmatpush1.bf16.msra.mxu0 0
      %911 = vmatprep.subr.bf16.mxu0 0
      %912 = vmatpush1.bf16.msra.mxu0 0
      %913 = vmatprep.mubr.bf16.mxu0 %v379
      %914 = vmatmul.mubr.bf16.gmra.mrb[0].mxu0 %v374
      %v915 = vpop.f32.mrb[0].mxu0
      %v916 = vadd.f32 %v361, %v915
      %v917 = vpop.f32.mrb[0].mxu0
      %v918 = vpop.f32.mrb[0].mxu0
      %v919 = vadd.f32 %v366, %v918
      %v920 = vpop.f32.mrb[0].mxu0
      %921 = vdwg.mxu0
      %v922 = vtanh.pop %v916
      %v923 = vtanh.pop %v919
      %v924 = vpack.c.bf16 %v923, %v922
      %925 = vmatprep.subr.bf16.mxu0 0
      %926 = vmatpush1.bf16.msra.mxu0 %v924
      %927 = vmatprep.subr.bf16.mxu0 0
      %928 = vmatpush1.bf16.msra.mxu0 0
      %929 = vmatprep.subr.bf16.mxu0 0
      %930 = vmatpush1.bf16.msra.mxu0 0
      %931 = vmatprep.subr.bf16.mxu0 0
      %932 = vmatpush1.bf16.msra.mxu0 0
      %933 = vmatprep.subr.bf16.mxu0 0
      %934 = vmatpush1.bf16.msra.mxu0 0
      %935 = vmatprep.subr.bf16.mxu0 0
      %936 = vmatpush1.bf16.msra.mxu0 0
      %937 = vmatprep.subr.bf16.mxu0 0
      %938 = vmatpush1.bf16.msra.mxu0 0
      %939 = vmatprep.subr.bf16.mxu0 0
      %940 = vmatpush1.bf16.msra.mxu0 0
      %941 = vmatprep.subr.bf16.mxu0 0
      %942 = vmatpush1.bf16.msra.mxu0 0
      %943 = vmatprep.subr.bf16.mxu0 0
      %944 = vmatpush1.bf16.msra.mxu0 0
      %945 = vmatprep.subr.bf16.mxu0 0
      %946 = vmatpush1.bf16.msra.mxu0 0
      %947 = vmatprep.subr.bf16.mxu0 0
      %948 = vmatpush1.bf16.msra.mxu0 0
      %949 = vmatprep.subr.bf16.mxu0 0
      %950 = vmatpush1.bf16.msra.mxu0 0
      %951 = vmatprep.subr.bf16.mxu0 0
      %952 = vmatpush1.bf16.msra.mxu0 0
      %953 = vmatprep.subr.bf16.mxu0 0
      %954 = vmatpush1.bf16.msra.mxu0 0
      %955 = vmatprep.subr.bf16.mxu0 0
      %956 = vmatpush1.bf16.msra.mxu0 0
      %957 = vmatprep.mubr.bf16.mxu0 0
      %958 = vmatmul.mubr.bf16.gmra.mrb[0].mxu0 %v607
      %v959 = vpop.f32.mrb[0].mxu0
      %v960 = vadd.f32 %v428, %v959
      %v961 = vpop.f32.mrb[0].mxu0
      %v962 = vpop.f32.mrb[0].mxu0
      %v963 = vadd.f32 %v433, %v962
      %v964 = vpop.f32.mrb[0].mxu0
      %965 = vmatprep.mubr.bf16.mxu0 0
      %966 = vmatmul.mubr.bf16.gmra.mrb[0].mxu0 %v610
      %v967 = vpop.f32.mrb[0].mxu0
      %v968 = vadd.f32 %v438, %v967
      %v969 = vpop.f32.mrb[0].mxu0
      %v970 = vpop.f32.mrb[0].mxu0
      %v971 = vadd.f32 %v443, %v970
      %v972 = vpop.f32.mrb[0].mxu0
      %973 = vmatprep.mubr.bf16.mxu0 0
      %974 = vmatmul.mubr.bf16.gmra.mrb[0].mxu0 %v613
      %v975 = vpop.f32.mrb[0].mxu0
      %v976 = vadd.f32 %v448, %v975
      %v977 = vpop.f32.mrb[0].mxu0
      %v978 = vpop.f32.mrb[0].mxu0
      %v979 = vadd.f32 %v453, %v978
      %v980 = vpop.f32.mrb[0].mxu0
      %981 = vmatprep.mubr.bf16.mxu0 0
      %982 = vmatmul.mubr.bf16.gmra.mrb[0].mxu0 %v616
      %v983 = vpop.f32.mrb[0].mxu0
      %v984 = vadd.f32 %v458, %v983
      %v985 = vpop.f32.mrb[0].mxu0
      %v986 = vpop.f32.mrb[0].mxu0
      %v987 = vadd.f32 %v463, %v986
      %v988 = vpop.f32.mrb[0].mxu0
      %989 = vmatprep.mubr.bf16.mxu0 0
      %990 = vmatmul.mubr.bf16.gmra.mrb[0].mxu0 %v619
      %v991 = vpop.f32.mrb[0].mxu0
      %v992 = vadd.f32 %v468, %v991
      %v993 = vpop.f32.mrb[0].mxu0
      %v994 = vpop.f32.mrb[0].mxu0
      %v995 = vadd.f32 %v473, %v994
      %v996 = vpop.f32.mrb[0].mxu0
      %997 = vmatprep.mubr.bf16.mxu0 0
      %998 = vmatmul.mubr.bf16.gmra.mrb[0].mxu0 %v622
      %v999 = vpop.f32.mrb[0].mxu0
      %v1000 = vadd.f32 %v478, %v999
      %v1001 = vpop.f32.mrb[0].mxu0
      %v1002 = vpop.f32.mrb[0].mxu0
      %v1003 = vadd.f32 %v483, %v1002
      %v1004 = vpop.f32.mrb[0].mxu0
      %1005 = vmatprep.mubr.bf16.mxu0 0
      %1006 = vmatmul.mubr.bf16.gmra.mrb[0].mxu0 %v625
      %v1007 = vpop.f32.mrb[0].mxu0
      %v1008 = vadd.f32 %v488, %v1007
      %v1009 = vpop.f32.mrb[0].mxu0
      %v1010 = vpop.f32.mrb[0].mxu0
      %v1011 = vadd.f32 %v493, %v1010
      %v1012 = vpop.f32.mrb[0].mxu0
      %1013 = vmatprep.mubr.bf16.mxu0 0
      %1014 = vmatmul.mubr.bf16.gmra.mrb[0].mxu0 %v628
      %v1015 = vpop.f32.mrb[0].mxu0
      %v1016 = vadd.f32 %v498, %v1015
      %v1017 = vpop.f32.mrb[0].mxu0
      %v1018 = vpop.f32.mrb[0].mxu0
      %v1019 = vadd.f32 %v503, %v1018
      %v1020 = vpop.f32.mrb[0].mxu0
      %1021 = vmatprep.mubr.bf16.mxu0 0
      %1022 = vmatmul.mubr.bf16.gmra.mrb[0].mxu0 %v631
      %v1023 = vpop.f32.mrb[0].mxu0
      %v1024 = vadd.f32 %v508, %v1023
      %v1025 = vpop.f32.mrb[0].mxu0
      %v1026 = vpop.f32.mrb[0].mxu0
      %v1027 = vadd.f32 %v513, %v1026
      %v1028 = vpop.f32.mrb[0].mxu0
      %1029 = vmatprep.mubr.bf16.mxu0 0
      %1030 = vmatmul.mubr.bf16.gmra.mrb[0].mxu0 %v634
      %v1031 = vpop.f32.mrb[0].mxu0
      %v1032 = vadd.f32 %v518, %v1031
      %v1033 = vpop.f32.mrb[0].mxu0
      %v1034 = vpop.f32.mrb[0].mxu0
      %v1035 = vadd.f32 %v523, %v1034
      %v1036 = vpop.f32.mrb[0].mxu0
      %1037 = vmatprep.mubr.bf16.mxu0 0
      %1038 = vmatmul.mubr.bf16.gmra.mrb[0].mxu0 %v637
      %v1039 = vpop.f32.mrb[0].mxu0
      %v1040 = vadd.f32 %v528, %v1039
      %v1041 = vpop.f32.mrb[0].mxu0
      %v1042 = vpop.f32.mrb[0].mxu0
      %v1043 = vadd.f32 %v533, %v1042
      %v1044 = vpop.f32.mrb[0].mxu0
      %1045 = vmatprep.mubr.bf16.mxu0 0
      %1046 = vmatmul.mubr.bf16.gmra.mrb[0].mxu0 %v640
      %v1047 = vpop.f32.mrb[0].mxu0
      %v1048 = vadd.f32 %v538, %v1047
      %v1049 = vpop.f32.mrb[0].mxu0
      %v1050 = vpop.f32.mrb[0].mxu0
      %v1051 = vadd.f32 %v543, %v1050
      %v1052 = vpop.f32.mrb[0].mxu0
      %1053 = vdwg.mxu0
      %v1054 = vpack.c.bf16 %v960, %v960
      %v1055 = vpack.c.bf16 %v963, %v963
      %v1056 = vpack.c.bf16 %v968, %v968
      %v1057 = vpack.c.bf16 %v971, %v971
      %v1058 = vpack.c.bf16 %v976, %v976
      %v1059 = vpack.c.bf16 %v979, %v979
      %v1060 = vpack.c.bf16 %v984, %v984
      %v1061 = vpack.c.bf16 %v987, %v987
      %v1062 = vpack.c.bf16 %v992, %v992
      %v1063 = vpack.c.bf16 %v995, %v995
      %v1064 = vpack.c.bf16 %v1000, %v1000
      %v1065 = vpack.c.bf16 %v1003, %v1003
      %v1066 = vpack.c.bf16 %v1008, %v1008
      %v1067 = vpack.c.bf16 %v1011, %v1011
      %v1068 = vpack.c.bf16 %v1016, %v1016
      %v1069 = vpack.c.bf16 %v1019, %v1019
      %v1070 = vpack.c.bf16 %v1024, %v1024
      %v1071 = vpack.c.bf16 %v1027, %v1027
      %v1072 = vpack.c.bf16 %v1032, %v1032
      %v1073 = vpack.c.bf16 %v1035, %v1035
      %v1074 = vpack.c.bf16 %v1040, %v1040
      %v1075 = vpack.c.bf16 %v1043, %v1043
      %v1076 = vpack.c.bf16 %v1048, %v1048
      %v1077 = vpack.c.bf16 %v1051, %v1051
      %v1078 = vtanh.bf16.pop %v1054
      %v1079 = vtanh.bf16.pop %v1055
      %v1080 = vtanh.bf16.pop %v1056
      %v1081 = vtanh.bf16.pop %v1057
      %v1082 = vtanh.bf16.pop %v1058
      %v1083 = vtanh.bf16.pop %v1059
      %v1084 = vtanh.bf16.pop %v1060
      %v1085 = vtanh.bf16.pop %v1061
      %v1086 = vtanh.bf16.pop %v1062
      %v1087 = vtanh.bf16.pop %v1063
      %v1088 = vtanh.bf16.pop %v1064
      %v1089 = vtanh.bf16.pop %v1065
      %v1090 = vtanh.bf16.pop %v1066
      %v1091 = vtanh.bf16.pop %v1067
      %v1092 = vtanh.bf16.pop %v1068
      %v1093 = vtanh.bf16.pop %v1069
      %v1094 = vtanh.bf16.pop %v1070
      %v1095 = vtanh.bf16.pop %v1071
      %v1096 = vtanh.bf16.pop %v1072
      %v1097 = vtanh.bf16.pop %v1073
      %v1098 = vtanh.bf16.pop %v1074
      %v1099 = vtanh.bf16.pop %v1075
      %v1100 = vtanh.bf16.pop %v1076
      %v1101 = vtanh.bf16.pop %v1077
      %s1102 = scalar_lea.vmem %s267, 32
      %1103 = vst.msk [vmem:[%s1102] sm:$0xf] %vm819, %v1078
      %1104 = vst.msk [vmem:[%s1102 + $0x4] sm:$0xf] %vm819, %v1079
      %1105 = vst.msk [vmem:[%s1102 + $0x8] sm:$0xf] %vm819, %v1080
      %1106 = vst.msk [vmem:[%s1102 + $0xc] sm:$0xf] %vm819, %v1081
      %1107 = vst.msk [vmem:[%s1102 + $0x10] sm:$0xf] %vm819, %v1082
      %1108 = vst.msk [vmem:[%s1102 + $0x14] sm:$0xf] %vm819, %v1083
      %1109 = vst.msk [vmem:[%s1102 + $0x18] sm:$0xf] %vm819, %v1084
      %1110 = vst.msk [vmem:[%s1102 + $0x1c] sm:$0xf] %vm819, %v1085
      %1111 = vst.msk [vmem:[%s1102 + $0x40] sm:$0xf] %vm819, %v1086
      %1112 = vst.msk [vmem:[%s1102 + $0x44] sm:$0xf] %vm819, %v1087
      %1113 = vst.msk [vmem:[%s1102 + $0x48] sm:$0xf] %vm819, %v1088
      %1114 = vst.msk [vmem:[%s1102 + $0x4c] sm:$0xf] %vm819, %v1089
      %1115 = vst.msk [vmem:[%s1102 + $0x50] sm:$0xf] %vm819, %v1090
      %1116 = vst.msk [vmem:[%s1102 + $0x54] sm:$0xf] %vm819, %v1091
      %1117 = vst.msk [vmem:[%s1102 + $0x58] sm:$0xf] %vm819, %v1092
      %1118 = vst.msk [vmem:[%s1102 + $0x5c] sm:$0xf] %vm819, %v1093
      %1119 = vst.msk [vmem:[%s1102 + $0x80] sm:$0xf] %vm819, %v1094
      %1120 = vst.msk [vmem:[%s1102 + $0x84] sm:$0xf] %vm819, %v1095
      %1121 = vst.msk [vmem:[%s1102 + $0x88] sm:$0xf] %vm819, %v1096
      %1122 = vst.msk [vmem:[%s1102 + $0x8c] sm:$0xf] %vm819, %v1097
      %1123 = vst.msk [vmem:[%s1102 + $0x90] sm:$0xf] %vm819, %v1098
      %1124 = vst.msk [vmem:[%s1102 + $0x94] sm:$0xf] %vm819, %v1099
      %1125 = vst.msk [vmem:[%s1102 + $0x98] sm:$0xf] %vm819, %v1100
      %1126 = vst.msk [vmem:[%s1102 + $0x9c] sm:$0xf] %vm819, %v1101
      %s1127 = smul.u32 2, %s21
      %p1128 = scmp.lt.s32.totalorder %s20, 1
      %s1129 = scalar_select %p1128, %s20, 1
      %p1130 = scmp.lt.s32.totalorder %s1127, 1
      %s1131 = scalar_select %p1130, %s1127, 1
      %s1132 = smul.addr %s1131, 8
      %s1133 = smul.addr %s1129, 48
      %s1134 = sadd.s32 %s1132, %s1133
      %s1135 = smul.addr %s1134, 4
      %s1136 = scalar_lea.vmem %s5, %s1135
      // Predicated region
      $region41: #{cosmos_ci_forward.1} parent=39 // pred_check
        %p1137 = pneg %p160
      $region42: #{cosmos_ci_forward.1} parent=39 // pred_check_branch
        %1139 = sbr.rel (%p1137) target = $region44
      $region43: #{cosmos_ci_forward.1} parent=39 // pred_region
        %s1140 = smul.u32 2, %s21
      $region44: #{cosmos_ci_forward.1} parent=39 // pred_fallthru
        _
    $region40: #{cosmos_ci_forward.1} parent=5 // pred_fallthru
      _
    %p1141 = scmp.le.s32.totalorder 2, %s11
    // Predicated region
    $region45: #{cosmos_ci_forward.1} parent=5 // pred_check
      %p1142 = pneg %p1141
    $region46: #{cosmos_ci_forward.1} parent=5 // pred_check_branch
      %1144 = sbr.rel (%p1142) target = $region48
    $region47: #{cosmos_ci_forward.1} parent=5 // pred_region
      %s1145 = ssub.s32 %s11, 2
      // Predicated region
      $region49: #{cosmos_ci_forward.1} parent=47 // pred_check
        %p1146 = pneg %p166
      $region50: #{cosmos_ci_forward.1} parent=47 // pred_check_branch
        %1148 = sbr.rel (%p1146) target = $region52
      $region51: #{cosmos_ci_forward.1} parent=47 // pred_region
        %s1149 = smul.u32 2, %s23
        %p1150 = scmp.lt.s32.totalorder %s22, 1
        %s1151 = scalar_select %p1150, %s22, 1
        %p1152 = scmp.lt.s32.totalorder %s1149, 1
        %s1153 = scalar_select %p1152, %s1149, 1
        %s1154 = smul.addr %s1153, 8
        %s1155 = smul.addr %s1151, 48
        %s1156 = sadd.s32 %s1154, %s1155
        %s1157 = smul.addr %s1156, 4
        %s1158 = scalar_lea.vmem %s5, %s1157
      $region52: #{cosmos_ci_forward.1} parent=47 // pred_fallthru
        _
    $region48: #{cosmos_ci_forward.1} parent=5 // pred_fallthru
      _
  $region6: #{cosmos_ci_forward.1} parent=0 // loop_footer
    %s15 = sadd.s32 1, %s11
  $region7: #{cosmos_ci_forward.1} parent=0 // loop_footer_branch
    %10 = sbr.rel target = $region3
  $region8: #{cosmos_ci_forward.1} parent=0 // loop_exit
    _

</llo_original>
